<compile_context>
chip_gen: v7x
topology: tpu7x:2x2x1
jax: 0.10.0
libtpu: 0.0.40
codegen_flags: <defaults>
</compile_context>

<pallas_src>
import jax
import jax.numpy as jnp
from jax.experimental import pallas as pl
from jax.experimental.pallas import tpu as pltpu  # noqa: F401  (kept for TPU-specific tuning hooks)


def _cond_embed_kernel(labels_ref, w1_ref, b1_ref, w2t_ref, emb_ref, out_ref):
    # labels_ref: (D, B, 1); NaN encodes a dropped (dim, row) pair.
    labels = labels_ref[...]
    drop = jnp.isnan(labels)                       # (D, B, 1)
    safe = jnp.where(drop, 0.0, labels)            # sanitize NaNs before compute

    # Per-dim Linear(1, H) + bias for all dims at once (pure VPU broadcasts).
    h1 = safe * w1_ref[...] + b1_ref[...]          # (D, B, H)

    # Softmax over the hidden axis (lane reduction on XLU, reciprocal on EUP).
    m = jnp.max(h1, axis=-1, keepdims=True)
    e = jnp.exp(h1 - m)
    denom = jnp.sum(e, axis=-1, keepdims=True)
    p = e * pl.reciprocal(denom, approx=True)      # (D, B, H)

    # Per-dim Linear(H, H, bias=False): one batched MXU pass over all dims.
    mlp = jnp.einsum("dbh,dhk->dbk", p, w2t_ref[...],
                     preferred_element_type=jnp.float32)   # (D, B, H)

    # Dropped rows take the embedding_drop row of that dim instead of the MLP.
    per_dim = jnp.where(drop, emb_ref[...], mlp)   # (D, B, H)

    # Sum over condition dims -> final embedding.  Single (B, H) store.
    out_ref[...] = jnp.sum(per_dim, axis=0)


def init_params(key, input_size, hidden_size):
    """Deterministic synthetic parameters matching the PyTorch module shapes."""
    k1, k2, k3, k4 = jax.random.split(key, 4)
    D, H = input_size, hidden_size
    # nn.Linear(1, H).weight -> (H, 1); per dim, stored broadcast-ready (D, 1, H)
    w1 = jax.random.normal(k1, (D, 1, H), jnp.float32) * 0.5
    b1 = jax.random.normal(k2, (D, 1, H), jnp.float32) * 0.1
    # nn.Linear(H, H, bias=False).weight -> (H, H); store transposed per dim
    w2 = jax.random.normal(k3, (D, H, H), jnp.float32) * (1.0 / jnp.sqrt(H))
    w2t = jnp.transpose(w2, (0, 2, 1))
    # nn.Embedding(D, H).weight -> (D, H); stored as (D, 1, H)
    emb = jax.random.normal(k4, (D, 1, H), jnp.float32)
    return {"w1": w1, "b1": b1, "w2t": w2t, "emb": emb}


def condition_embedder(labels, params, *, train=False, unconditioned=False,
                       dropout_prob=0.1, rng=None):
    B, D = labels.shape
    H = params["w1"].shape[-1]

    # Encode every drop source as NaN in `labels` (cheap XLA glue, matches the
    # PyTorch control flow); the kernel recovers the mask via isnan.
    if unconditioned:
        labels = jnp.full_like(labels, jnp.nan)
    elif train:
        if rng is None:
            raise ValueError("train=True requires an rng key")
        rng, k = jax.random.split(rng)
        drop_extra = jax.random.uniform(k, labels.shape) < dropout_prob
        labels = jnp.where(drop_extra, jnp.nan, labels)

    # (B, D) -> (D, B, 1): each condition dim arrives as a broadcast-ready
    # column; no dynamic lane indexing inside the kernel.
    labels_dbl = jnp.transpose(labels)[:, :, None]

    out = pl.pallas_call(
        _cond_embed_kernel,
        out_shape=jax.ShapeDtypeStruct((B, H), jnp.float32),
    )(labels_dbl, params["w1"], params["b1"], params["w2t"], params["emb"])

    if train:
        # PyTorch adds randn_like(embedding) once per dim (dropped rows too);
        # the sum of D iid normals == sqrt(D) * one normal.  Distributionally
        # identical, not sample-for-sample reproducible vs torch RNG.
        rng, k = jax.random.split(rng)
        out = out + jnp.sqrt(jnp.float32(D)) * jax.random.normal(k, (B, H), out.dtype)
    return out


def _reference(labels, params):
    """Pure-JAX reference of the eval (train=False, unconditioned=False) path."""
    B, D = labels.shape
    H = params["w1"].shape[-1]
    total = jnp.zeros((B, H), jnp.float32)
    for d in range(D):
        label = labels[:, d]
        drop = jnp.isnan(label)
        safe = jnp.where(drop, 0.0, label)
        h1 = safe[:, None] * params["w1"][d, 0] + params["b1"][d, 0]
        p = jax.nn.softmax(h1, axis=1)
        mlp_out = p @ params["w2t"][d]
        emb = jnp.where(drop[:, None], params["emb"][d, 0][None, :], mlp_out)
        total = total + emb
    return total


if __name__ == "__main__":
    B, D, H = 8, 4, 32          # batch, input_size (num conditions), hidden_size
    key = jax.random.PRNGKey(0)
    kp, kl = jax.random.split(key)

    params = init_params(kp, D, H)
    labels = jax.random.normal(kl, (B, D), jnp.float32)
    # Inject some NaNs -> those (row, dim) entries fall back to embedding_drop.
    labels = labels.at[0, 1].set(jnp.nan)
    labels = labels.at[3, 0].set(jnp.nan)
    labels = labels.at[5, 3].set(jnp.nan)

    # Eval path: check against the pure-JAX reference.
    out = condition_embedder(labels, params, train=False, unconditioned=False)
    out = jax.block_until_ready(out)
    ref = _reference(labels, params)
    assert out.shape == (B, H)
    assert jnp.allclose(out, ref, atol=1e-3, rtol=1e-3), "mismatch vs reference"

    # Unconditioned path: every row should be the sum of the drop-embedding rows.
    out_unc = jax.block_until_ready(
        condition_embedder(labels, params, train=False, unconditioned=True))
    ref_unc = jnp.broadcast_to(params["emb"][:, 0, :].sum(0), (B, H))
    assert jnp.allclose(out_unc, ref_unc, atol=1e-3, rtol=1e-3), "unconditioned mismatch"

    # Train path smoke test (adds dropout + Gaussian noise; distribution-level match).
    out_tr = jax.block_until_ready(
        condition_embedder(labels, params, train=True, rng=jax.random.PRNGKey(1)))
    assert out_tr.shape == (B, H)
    assert bool(jnp.all(jnp.isfinite(out_tr)))

    print("KERNEL_OK")
</pallas_src>

<mosaic_0001>
module attributes {stable_mosaic.version = 11 : i64} {
  func.func @_cond_embed_kernel(%arg0: memref<4x8x1xf32, #tpu.memory_space<vmem>>, %arg1: memref<4x1x32xf32, #tpu.memory_space<vmem>>, %arg2: memref<4x1x32xf32, #tpu.memory_space<vmem>>, %arg3: memref<4x32x32xf32, #tpu.memory_space<vmem>>, %arg4: memref<4x1x32xf32, #tpu.memory_space<vmem>>, %arg5: memref<8x32xf32, #tpu.memory_space<vmem>>) attributes {dimension_semantics = [], scalar_prefetch = 0 : i64, scratch_operands = 0 : i64, tpu.core_type = #tpu.core_type<tc>} {
    %c0 = arith.constant 0 : index
    %c0_0 = arith.constant 0 : index
    %c0_1 = arith.constant 0 : index
    %0 = vector.load %arg0[%c0, %c0_0, %c0_1] : memref<4x8x1xf32, #tpu.memory_space<vmem>>, vector<4x8x1xf32>
    %1 = arith.cmpf one, %0, %0 : vector<4x8x1xf32>
    %cst = arith.constant 0.000000e+00 : f32
    %2 = vector.broadcast %cst : f32 to vector<4x8x1xf32>
    %3 = arith.select %1, %2, %0 : vector<4x8x1xi1>, vector<4x8x1xf32>
    %c0_2 = arith.constant 0 : index
    %c0_3 = arith.constant 0 : index
    %c0_4 = arith.constant 0 : index
    %4 = vector.load %arg1[%c0_2, %c0_3, %c0_4] : memref<4x1x32xf32, #tpu.memory_space<vmem>>, vector<4x1x32xf32>
    %5 = vector.broadcast %3 : vector<4x8x1xf32> to vector<4x8x32xf32>
    %6 = vector.broadcast %4 : vector<4x1x32xf32> to vector<4x8x32xf32>
    %7 = arith.mulf %5, %6 : vector<4x8x32xf32>
    %c0_5 = arith.constant 0 : index
    %c0_6 = arith.constant 0 : index
    %c0_7 = arith.constant 0 : index
    %8 = vector.load %arg2[%c0_5, %c0_6, %c0_7] : memref<4x1x32xf32, #tpu.memory_space<vmem>>, vector<4x1x32xf32>
    %9 = vector.broadcast %8 : vector<4x1x32xf32> to vector<4x8x32xf32>
    %10 = arith.addf %7, %9 : vector<4x8x32xf32>
    %cst_8 = arith.constant dense<0xFF800000> : vector<4x8xf32>
    %11 = vector.multi_reduction <maximumf>, %10, %cst_8 [2] : vector<4x8x32xf32> to vector<4x8xf32>
    %12 = vector.shape_cast %11 : vector<4x8xf32> to vector<4x8x1xf32>
    %13 = vector.broadcast %12 : vector<4x8x1xf32> to vector<4x8x32xf32>
    %14 = arith.subf %10, %13 : vector<4x8x32xf32>
    %15 = math.exp %14 : vector<4x8x32xf32>
    %cst_9 = arith.constant dense<0.000000e+00> : vector<4x8xf32>
    %16 = vector.multi_reduction <add>, %15, %cst_9 [2] : vector<4x8x32xf32> to vector<4x8xf32>
    %17 = vector.shape_cast %16 : vector<4x8xf32> to vector<4x8x1xf32>
    %18 = tpu.reciprocal %17 {approx = true} : vector<4x8x1xf32> -> vector<4x8x1xf32>
    %19 = vector.broadcast %18 : vector<4x8x1xf32> to vector<4x8x32xf32>
    %20 = arith.mulf %15, %19 : vector<4x8x32xf32>
    %c0_10 = arith.constant 0 : index
    %c0_11 = arith.constant 0 : index
    %c0_12 = arith.constant 0 : index
    %21 = vector.load %arg3[%c0_10, %c0_11, %c0_12] : memref<4x32x32xf32, #tpu.memory_space<vmem>>, vector<4x32x32xf32>
    "tpu.trace_start"() <{level = 10 : i32, message = "dbh,dhk->dbk"}> : () -> ()
    %cst_13 = arith.constant dense<0.000000e+00> : vector<4x8x32xf32>
    %22 = tpu.matmul %20, %21, %cst_13 {dimension_numbers = #tpu.dot_dimension_numbers<[2], [1], [1], [2], [0, 0, 0, 1, 1, 2], [0], [0]>} : vector<4x8x32xf32>, vector<4x32x32xf32>, vector<4x8x32xf32> -> vector<4x8x32xf32>
    "tpu.trace_stop"() : () -> ()
    %c0_14 = arith.constant 0 : index
    %c0_15 = arith.constant 0 : index
    %c0_16 = arith.constant 0 : index
    %23 = vector.load %arg4[%c0_14, %c0_15, %c0_16] : memref<4x1x32xf32, #tpu.memory_space<vmem>>, vector<4x1x32xf32>
    %24 = vector.shape_cast %1 : vector<4x8x1xi1> to vector<4x8x1xi1>
    %25 = vector.broadcast %24 : vector<4x8x1xi1> to vector<4x8x32xi1>
    %26 = vector.shape_cast %23 : vector<4x1x32xf32> to vector<4x1x32xf32>
    %27 = vector.broadcast %26 : vector<4x1x32xf32> to vector<4x8x32xf32>
    %28 = arith.select %25, %27, %22 : vector<4x8x32xi1>, vector<4x8x32xf32>
    %cst_17 = arith.constant dense<0.000000e+00> : vector<8x32xf32>
    %29 = vector.multi_reduction <add>, %28, %cst_17 [0] : vector<4x8x32xf32> to vector<8x32xf32>
    %c0_18 = arith.constant 0 : index
    %c0_19 = arith.constant 0 : index
    %30 = vector.load %arg5[%c0_18, %c0_19] : memref<8x32xf32, #tpu.memory_space<vmem>>, vector<8x32xf32>
    tpu.vector_store %arg5[%c0_18, %c0_19], %29 {strides = array<i32>} : memref<8x32xf32, #tpu.memory_space<vmem>>, vector<8x32xf32>,
    return
  }
}

</mosaic_0001>

<llo_original>
// kernel: tpu_custom_call.1
$region0: #{tpu_custom_call.1}
  #allocation0 [shape = 'u32[]', space=smem, size = 0x4, offset = 0x4, fixed_abs, tag = 'smem constant byte address 0x4 - core index']
  #allocation1 [shape = 'u32[144,128]{1,0:T(1,128)}', space=vmem, size = 0x12000, scoped, tag = 'internal scratch']
  %s0 = inlined_call_operand.vmem [shape: f32[4,8,1], index: 0, kind: input, shape index: {}]
  %s1 = inlined_call_operand.vmem [shape: f32[4,1,32], index: 1, kind: input, shape index: {}]
  %s2 = inlined_call_operand.vmem [shape: f32[4,1,32], index: 2, kind: input, shape index: {}]
  %s3 = inlined_call_operand.hbm [shape: f32[4,32,32], index: 3, kind: input, shape index: {}]
  %s4 = inlined_call_operand.vmem [shape: f32[4,1,32], index: 4, kind: input, shape index: {}]
  %s5 = inlined_call_operand.hbm [shape: f32[8,32], index: 5, kind: output, shape index: {}]
  %s6 = sld [smem:[#allocation0]]
  $region34: #{tpu_custom_call.1} parent=0
    _
  %s8 = ssub.s32 1, %s6
  %s9 = scalar_select 0, %s8, %s6
  $region1: #{tpu_custom_call.1} parent=0
    #allocation2 [shape = 'u8[65536]{0}', space=vmem, size = 0x10000, scoped, tag = 'input window, operand 3, single buffered']
    #allocation3 [shape = 's32[1]{0}', space=sflag, size = 0x4, scoped, tag = 'scoped memory for tpu_custom_call.1']
    #allocation4 [shape = 's32[1]{0}', space=sflag, size = 0x4, scoped, tag = 'scoped memory for tpu_custom_call.1']
    #allocation5 [shape = 'u8[4096]{0}', space=vmem, size = 0x1000, scoped, tag = 'output window, operand 0, single buffered']
    %10 = vsyncpa [#allocation3], 0
    %11 = vsyncpa [#allocation4], 0
    // Predicated region
    $region2: #{tpu_custom_call.1} parent=1 // pred_check
      _
    $region3: #{tpu_custom_call.1} parent=1 // pred_check_branch
      %13 = sbr.rel (0) target = $region5
    $region4: #{tpu_custom_call.1} parent=1 // pred_region
      _
    $region5: #{tpu_custom_call.1} parent=1 // pred_fallthru
      _
    // Predicated region
    $region6: #{tpu_custom_call.1} parent=1 // pred_check
      _
    $region7: #{tpu_custom_call.1} parent=1 // pred_check_branch
      %15 = sbr.rel (0) target = $region9
    $region8: #{tpu_custom_call.1} parent=1 // pred_region
      _
    $region9: #{tpu_custom_call.1} parent=1 // pred_fallthru
      _
    // Predicated region
    $region10: #{tpu_custom_call.1} parent=1 // pred_check
      _
    $region11: #{tpu_custom_call.1} parent=1 // pred_check_branch
      %17 = sbr.rel (0) target = $region13
    $region12: #{tpu_custom_call.1} parent=1 // pred_region
      _
    $region13: #{tpu_custom_call.1} parent=1 // pred_fallthru
      _
    // Predicated region
    $region14: #{tpu_custom_call.1} parent=1 // pred_check
      _
    $region15: #{tpu_custom_call.1} parent=1 // pred_check_branch
      %19 = sbr.rel (0) target = $region17
    $region16: #{tpu_custom_call.1} parent=1 // pred_region
      %s21 = ssub.s32 2048, 2048
      %22 = vsyncadd [#allocation3], %s21
      %s23 = sshll.u32 [#allocation2], 4
      %s24 = int_to_ptr.vmem [resolvable:$true] %s23
      %29 = dma.hbm_to_vmem [thread:$0]  %s3, 2048, %s24, [#allocation3], 128, 128, 8
    $region17: #{tpu_custom_call.1} parent=1 // pred_fallthru
      _
    // Predicated region
    $region18: #{tpu_custom_call.1} parent=1 // pred_check
      _
    $region19: #{tpu_custom_call.1} parent=1 // pred_check_branch
      %31 = sbr.rel (0) target = $region21
    $region20: #{tpu_custom_call.1} parent=1 // pred_region
      _
    $region21: #{tpu_custom_call.1} parent=1 // pred_fallthru
      _
    // Predicated region
    $region22: #{tpu_custom_call.1} parent=1 // pred_check
      _
    $region23: #{tpu_custom_call.1} parent=1 // pred_check_branch
      %33 = sbr.rel (0) target = $region25
    $region24: #{tpu_custom_call.1} parent=1 // pred_region
      %34 = dma.done [#allocation3], 2048
    $region25: #{tpu_custom_call.1} parent=1 // pred_fallthru
      _
    %v35 = vld [vmem:[%s0] sm:$0xff]
    %v36 = vld [vmem:[%s0 + $0x8] sm:$0xff]
    %v37 = vld [vmem:[%s0 + $0x10] sm:$0xff]
    %v38 = vld [vmem:[%s0 + $0x18] sm:$0xff]
    %vm39 = vcmp.ne.f32.partialorder %v35, %v35
    %vm40 = vcmp.ne.f32.partialorder %v36, %v36
    %vm41 = vcmp.ne.f32.partialorder %v37, %v37
    %vm42 = vcmp.ne.f32.partialorder %v38, %v38
    %v43 = vsel %vm39, 0.0, %v35
    %v44 = vsel %vm40, 0.0, %v36
    %v45 = vsel %vm41, 0.0, %v37
    %v46 = vsel %vm42, 0.0, %v38
    %v47 = vld [vmem:[%s1] sm:$0x1]
    %v48 = vld [vmem:[%s1 + $0x1] sm:$0x1]
    %v49 = vld [vmem:[%s1 + $0x2] sm:$0x1]
    %v50 = vld [vmem:[%s1 + $0x3] sm:$0x1]
    %52 = vset.pattern.permute.xlu0 0
    %53 = vperm.xlu0 %52, %v43
    %v54 = vpop.permute.xlu0 %53
    %57 = vset.pattern.permute.xlu0 0
    %58 = vperm.xlu0 %57, %v44
    %v59 = vpop.permute.xlu0 %58
    %62 = vset.pattern.permute.xlu0 0
    %63 = vperm.xlu0 %62, %v45
    %v64 = vpop.permute.xlu0 %63
    %67 = vset.pattern.permute.xlu0 0
    %68 = vperm.xlu0 %67, %v46
    %v69 = vpop.permute.xlu0 %68
    %v75 = vlaneseq
    %v76 = vshrl.u32 %v75, 7
    %v77 = vsub.s32 0, %v76
    %v78 = vrot.slane %v47, %v77
    %v79 = vlaneseq
    %v80 = vshrl.u32 %v79, 7
    %v81 = vsub.s32 0, %v80
    %v82 = vrot.slane %v48, %v81
    %v83 = vlaneseq
    %v84 = vshrl.u32 %v83, 7
    %v85 = vsub.s32 0, %v84
    %v86 = vrot.slane %v49, %v85
    %v87 = vlaneseq
    %v88 = vshrl.u32 %v87, 7
    %v89 = vsub.s32 0, %v88
    %v90 = vrot.slane %v50, %v89
    %v95 = vmul.f32 %v54, %v78
    %v96 = vmul.f32 %v59, %v82
    %v97 = vmul.f32 %v64, %v86
    %v98 = vmul.f32 %v69, %v90
    %v99 = vld [vmem:[%s2] sm:$0x1]
    %v100 = vld [vmem:[%s2 + $0x1] sm:$0x1]
    %v101 = vld [vmem:[%s2 + $0x2] sm:$0x1]
    %v102 = vld [vmem:[%s2 + $0x3] sm:$0x1]
    %v107 = vlaneseq
    %v108 = vshrl.u32 %v107, 7
    %v109 = vsub.s32 0, %v108
    %v110 = vrot.slane %v99, %v109
    %v111 = vlaneseq
    %v112 = vshrl.u32 %v111, 7
    %v113 = vsub.s32 0, %v112
    %v114 = vrot.slane %v100, %v113
    %v115 = vlaneseq
    %v116 = vshrl.u32 %v115, 7
    %v117 = vsub.s32 0, %v116
    %v118 = vrot.slane %v101, %v117
    %v119 = vlaneseq
    %v120 = vshrl.u32 %v119, 7
    %v121 = vsub.s32 0, %v120
    %v122 = vrot.slane %v102, %v121
    %v127 = vadd.f32 %v95, %v110
    %v128 = vadd.f32 %v96, %v114
    %v129 = vadd.f32 %v97, %v118
    %v130 = vadd.f32 %v98, %v122
    %vm131 = vcmask 261120
    %v132 = vsel %vm131, %v127, -inf
    %133 = vmax.xlane.f32.xlu0 %v132
    %v134 = vpop.xlane.xlu0 %133
    %v135 = vsel %vm131, %v128, -inf
    %136 = vmax.xlane.f32.xlu0 %v135
    %v137 = vpop.xlane.xlu0 %136
    %v138 = vsel %vm131, %v129, -inf
    %139 = vmax.xlane.f32.xlu0 %v138
    %v140 = vpop.xlane.xlu0 %139
    %v141 = vsel %vm131, %v130, -inf
    %142 = vmax.xlane.f32.xlu0 %v141
    %v143 = vpop.xlane.xlu0 %142
    %v144 = vsub.f32 %v127, %v134
    %v145 = vsub.f32 %v128, %v137
    %v146 = vsub.f32 %v129, %v140
    %v147 = vsub.f32 %v130, %v143
    %v148 = vmul.f32 %v144, 1.442695
    %v149 = vpow.pop %v148
    %v150 = vmul.f32 %v145, 1.442695
    %v151 = vpow.pop %v150
    %v152 = vmul.f32 %v146, 1.442695
    %v153 = vpow.pop %v152
    %v154 = vmul.f32 %v147, 1.442695
    %v155 = vpow.pop %v154
    %v156 = vsel %vm131, %v149, 0.0
    %157 = vadd.xlane.f32.xlu0 %v156
    %v158 = vpop.xlane.xlu0 %157
    %v159 = vsel %vm131, %v151, 0.0
    %160 = vadd.xlane.f32.xlu0 %v159
    %v161 = vpop.xlane.xlu0 %160
    %v162 = vsel %vm131, %v153, 0.0
    %163 = vadd.xlane.f32.xlu0 %v162
    %v164 = vpop.xlane.xlu0 %163
    %v165 = vsel %vm131, %v155, 0.0
    %166 = vadd.xlane.f32.xlu0 %v165
    %v167 = vpop.xlane.xlu0 %166
    %v168 = vrcp.pop %v158
    %v169 = vrcp.pop %v161
    %v170 = vrcp.pop %v164
    %v171 = vrcp.pop %v167
    %v172 = vmul.f32 %v149, %v168
    %v173 = vmul.f32 %v151, %v169
    %v174 = vmul.f32 %v153, %v170
    %v175 = vmul.f32 %v155, %v171
    %v176 = vld [vmem:[#allocation2] sm:$0xff]
    %v177 = vld [vmem:[#allocation2 + $0x8] sm:$0xff]
    %v178 = vld [vmem:[#allocation2 + $0x10] sm:$0xff]
    %v179 = vld [vmem:[#allocation2 + $0x18] sm:$0xff]
    %v180 = vld [vmem:[#allocation2 + $0x20] sm:$0xff]
    %v181 = vld [vmem:[#allocation2 + $0x28] sm:$0xff]
    %v182 = vld [vmem:[#allocation2 + $0x30] sm:$0xff]
    %v183 = vld [vmem:[#allocation2 + $0x38] sm:$0xff]
    %v184 = vld [vmem:[#allocation2 + $0x40] sm:$0xff]
    %v185 = vld [vmem:[#allocation2 + $0x48] sm:$0xff]
    %v186 = vld [vmem:[#allocation2 + $0x50] sm:$0xff]
    %v187 = vld [vmem:[#allocation2 + $0x58] sm:$0xff]
    %v188 = vld [vmem:[#allocation2 + $0x60] sm:$0xff]
    %v189 = vld [vmem:[#allocation2 + $0x68] sm:$0xff]
    %v190 = vld [vmem:[#allocation2 + $0x70] sm:$0xff]
    %v191 = vld [vmem:[#allocation2 + $0x78] sm:$0xff]
    %v193 = vsel %vm131, %v172, 0
    %195 = vmatprep.subr.mxu0 0.0
    %196 = vmatpush1.msra.mxu0 %v176
    %197 = vmatprep.subr.mxu0 0.0
    %198 = vmatpush1.msra.mxu0 %v177
    %199 = vmatprep.subr.mxu0 0.0
    %200 = vmatpush1.msra.mxu0 %v178
    %201 = vmatprep.subr.mxu0 0.0
    %202 = vmatpush1.msra.mxu0 %v179
    %203 = vmatprep.subr.mxu0 0.0
    %204 = vmatpush1.msra.mxu0 0.0
    %205 = vmatprep.subr.mxu0 0.0
    %206 = vmatpush1.msra.mxu0 0.0
    %207 = vmatprep.subr.mxu0 0.0
    %208 = vmatpush1.msra.mxu0 0.0
    %209 = vmatprep.subr.mxu0 0.0
    %210 = vmatpush1.msra.mxu0 0.0
    %211 = vmatprep.subr.mxu0 0.0
    %212 = vmatpush1.msra.mxu0 0.0
    %213 = vmatprep.subr.mxu0 0.0
    %214 = vmatpush1.msra.mxu0 0.0
    %215 = vmatprep.subr.mxu0 0.0
    %216 = vmatpush1.msra.mxu0 0.0
    %217 = vmatprep.subr.mxu0 0.0
    %218 = vmatpush1.msra.mxu0 0.0
    %219 = vmatprep.subr.mxu0 0.0
    %220 = vmatpush1.msra.mxu0 0.0
    %221 = vmatprep.subr.mxu0 0.0
    %222 = vmatpush1.msra.mxu0 0.0
    %223 = vmatprep.subr.mxu0 0.0
    %224 = vmatpush1.msra.mxu0 0.0
    %225 = vmatprep.subr.mxu0 0.0
    %226 = vmatpush1.msra.mxu0 0.0
    %227 = vmatprep.subr.mxu0 0.0
    %228 = vmatpush1.msra.mxu0 0.0
    %229 = vmatprep.subr.mxu0 0.0
    %230 = vmatpush1.msra.mxu0 0.0
    %231 = vmatprep.subr.mxu0 0.0
    %232 = vmatpush1.msra.mxu0 0.0
    %233 = vmatprep.subr.mxu0 0.0
    %234 = vmatpush1.msra.mxu0 0.0
    %235 = vmatprep.subr.mxu0 0.0
    %236 = vmatpush1.msra.mxu0 0.0
    %237 = vmatprep.subr.mxu0 0.0
    %238 = vmatpush1.msra.mxu0 0.0
    %239 = vmatprep.subr.mxu0 0.0
    %240 = vmatpush1.msra.mxu0 0.0
    %241 = vmatprep.subr.mxu0 0.0
    %242 = vmatpush1.msra.mxu0 0.0
    %243 = vmatprep.subr.mxu0 0.0
    %244 = vmatpush1.msra.mxu0 0.0
    %245 = vmatprep.subr.mxu0 0.0
    %246 = vmatpush1.msra.mxu0 0.0
    %247 = vmatprep.subr.mxu0 0.0
    %248 = vmatpush1.msra.mxu0 0.0
    %249 = vmatprep.subr.mxu0 0.0
    %250 = vmatpush1.msra.mxu0 0.0
    %251 = vmatprep.subr.mxu0 0.0
    %252 = vmatpush1.msra.mxu0 0.0
    %253 = vmatprep.subr.mxu0 0.0
    %254 = vmatpush1.msra.mxu0 0.0
    %255 = vmatprep.subr.mxu0 0.0
    %256 = vmatpush1.msra.mxu0 0.0
    %257 = vmatprep.subr.mxu0 0.0
    %258 = vmatpush1.msra.mxu0 0.0
    %259 = vmatprep.mubr.f32.mxu0 0.0
    %260 = vmatmul.mubr.f32.gmra.mrb[0].mxu0 %v193
    %v261 = vpop.f32.mrb[0].mxu0
    %v262 = vadd.f32 0.0, %v261
    %v263 = vpop.f32.mrb[0].mxu0
    %264 = vdwg.mxu0
    %v266 = vsel %vm131, %v173, 0
    %268 = vmatprep.subr.mxu0 0.0
    %269 = vmatpush1.msra.mxu0 %v180
    %270 = vmatprep.subr.mxu0 0.0
    %271 = vmatpush1.msra.mxu0 %v181
    %272 = vmatprep.subr.mxu0 0.0
    %273 = vmatpush1.msra.mxu0 %v182
    %274 = vmatprep.subr.mxu0 0.0
    %275 = vmatpush1.msra.mxu0 %v183
    %276 = vmatprep.subr.mxu0 0.0
    %277 = vmatpush1.msra.mxu0 0.0
    %278 = vmatprep.subr.mxu0 0.0
    %279 = vmatpush1.msra.mxu0 0.0
    %280 = vmatprep.subr.mxu0 0.0
    %281 = vmatpush1.msra.mxu0 0.0
    %282 = vmatprep.subr.mxu0 0.0
    %283 = vmatpush1.msra.mxu0 0.0
    %284 = vmatprep.subr.mxu0 0.0
    %285 = vmatpush1.msra.mxu0 0.0
    %286 = vmatprep.subr.mxu0 0.0
    %287 = vmatpush1.msra.mxu0 0.0
    %288 = vmatprep.subr.mxu0 0.0
    %289 = vmatpush1.msra.mxu0 0.0
    %290 = vmatprep.subr.mxu0 0.0
    %291 = vmatpush1.msra.mxu0 0.0
    %292 = vmatprep.subr.mxu0 0.0
    %293 = vmatpush1.msra.mxu0 0.0
    %294 = vmatprep.subr.mxu0 0.0
    %295 = vmatpush1.msra.mxu0 0.0
    %296 = vmatprep.subr.mxu0 0.0
    %297 = vmatpush1.msra.mxu0 0.0
    %298 = vmatprep.subr.mxu0 0.0
    %299 = vmatpush1.msra.mxu0 0.0
    %300 = vmatprep.subr.mxu0 0.0
    %301 = vmatpush1.msra.mxu0 0.0
    %302 = vmatprep.subr.mxu0 0.0
    %303 = vmatpush1.msra.mxu0 0.0
    %304 = vmatprep.subr.mxu0 0.0
    %305 = vmatpush1.msra.mxu0 0.0
    %306 = vmatprep.subr.mxu0 0.0
    %307 = vmatpush1.msra.mxu0 0.0
    %308 = vmatprep.subr.mxu0 0.0
    %309 = vmatpush1.msra.mxu0 0.0
    %310 = vmatprep.subr.mxu0 0.0
    %311 = vmatpush1.msra.mxu0 0.0
    %312 = vmatprep.subr.mxu0 0.0
    %313 = vmatpush1.msra.mxu0 0.0
    %314 = vmatprep.subr.mxu0 0.0
    %315 = vmatpush1.msra.mxu0 0.0
    %316 = vmatprep.subr.mxu0 0.0
    %317 = vmatpush1.msra.mxu0 0.0
    %318 = vmatprep.subr.mxu0 0.0
    %319 = vmatpush1.msra.mxu0 0.0
    %320 = vmatprep.subr.mxu0 0.0
    %321 = vmatpush1.msra.mxu0 0.0
    %322 = vmatprep.subr.mxu0 0.0
    %323 = vmatpush1.msra.mxu0 0.0
    %324 = vmatprep.subr.mxu0 0.0
    %325 = vmatpush1.msra.mxu0 0.0
    %326 = vmatprep.subr.mxu0 0.0
    %327 = vmatpush1.msra.mxu0 0.0
    %328 = vmatprep.subr.mxu0 0.0
    %329 = vmatpush1.msra.mxu0 0.0
    %330 = vmatprep.subr.mxu0 0.0
    %331 = vmatpush1.msra.mxu0 0.0
    %332 = vmatprep.mubr.f32.mxu0 0.0
    %333 = vmatmul.mubr.f32.gmra.mrb[0].mxu0 %v266
    %v334 = vpop.f32.mrb[0].mxu0
    %v335 = vadd.f32 0.0, %v334
    %v336 = vpop.f32.mrb[0].mxu0
    %337 = vdwg.mxu0
    %v339 = vsel %vm131, %v174, 0
    %341 = vmatprep.subr.mxu0 0.0
    %342 = vmatpush1.msra.mxu0 %v184
    %343 = vmatprep.subr.mxu0 0.0
    %344 = vmatpush1.msra.mxu0 %v185
    %345 = vmatprep.subr.mxu0 0.0
    %346 = vmatpush1.msra.mxu0 %v186
    %347 = vmatprep.subr.mxu0 0.0
    %348 = vmatpush1.msra.mxu0 %v187
    %349 = vmatprep.subr.mxu0 0.0
    %350 = vmatpush1.msra.mxu0 0.0
    %351 = vmatprep.subr.mxu0 0.0
    %352 = vmatpush1.msra.mxu0 0.0
    %353 = vmatprep.subr.mxu0 0.0
    %354 = vmatpush1.msra.mxu0 0.0
    %355 = vmatprep.subr.mxu0 0.0
    %356 = vmatpush1.msra.mxu0 0.0
    %357 = vmatprep.subr.mxu0 0.0
    %358 = vmatpush1.msra.mxu0 0.0
    %359 = vmatprep.subr.mxu0 0.0
    %360 = vmatpush1.msra.mxu0 0.0
    %361 = vmatprep.subr.mxu0 0.0
    %362 = vmatpush1.msra.mxu0 0.0
    %363 = vmatprep.subr.mxu0 0.0
    %364 = vmatpush1.msra.mxu0 0.0
    %365 = vmatprep.subr.mxu0 0.0
    %366 = vmatpush1.msra.mxu0 0.0
    %367 = vmatprep.subr.mxu0 0.0
    %368 = vmatpush1.msra.mxu0 0.0
    %369 = vmatprep.subr.mxu0 0.0
    %370 = vmatpush1.msra.mxu0 0.0
    %371 = vmatprep.subr.mxu0 0.0
    %372 = vmatpush1.msra.mxu0 0.0
    %373 = vmatprep.subr.mxu0 0.0
    %374 = vmatpush1.msra.mxu0 0.0
    %375 = vmatprep.subr.mxu0 0.0
    %376 = vmatpush1.msra.mxu0 0.0
    %377 = vmatprep.subr.mxu0 0.0
    %378 = vmatpush1.msra.mxu0 0.0
    %379 = vmatprep.subr.mxu0 0.0
    %380 = vmatpush1.msra.mxu0 0.0
    %381 = vmatprep.subr.mxu0 0.0
    %382 = vmatpush1.msra.mxu0 0.0
    %383 = vmatprep.subr.mxu0 0.0
    %384 = vmatpush1.msra.mxu0 0.0
    %385 = vmatprep.subr.mxu0 0.0
    %386 = vmatpush1.msra.mxu0 0.0
    %387 = vmatprep.subr.mxu0 0.0
    %388 = vmatpush1.msra.mxu0 0.0
    %389 = vmatprep.subr.mxu0 0.0
    %390 = vmatpush1.msra.mxu0 0.0
    %391 = vmatprep.subr.mxu0 0.0
    %392 = vmatpush1.msra.mxu0 0.0
    %393 = vmatprep.subr.mxu0 0.0
    %394 = vmatpush1.msra.mxu0 0.0
    %395 = vmatprep.subr.mxu0 0.0
    %396 = vmatpush1.msra.mxu0 0.0
    %397 = vmatprep.subr.mxu0 0.0
    %398 = vmatpush1.msra.mxu0 0.0
    %399 = vmatprep.subr.mxu0 0.0
    %400 = vmatpush1.msra.mxu0 0.0
    %401 = vmatprep.subr.mxu0 0.0
    %402 = vmatpush1.msra.mxu0 0.0
    %403 = vmatprep.subr.mxu0 0.0
    %404 = vmatpush1.msra.mxu0 0.0
    %405 = vmatprep.mubr.f32.mxu0 0.0
    %406 = vmatmul.mubr.f32.gmra.mrb[0].mxu0 %v339
    %v407 = vpop.f32.mrb[0].mxu0
    %v408 = vadd.f32 0.0, %v407
    %v409 = vpop.f32.mrb[0].mxu0
    %410 = vdwg.mxu0
    %v412 = vsel %vm131, %v175, 0
    %414 = vmatprep.subr.mxu0 0.0
    %415 = vmatpush1.msra.mxu0 %v188
    %416 = vmatprep.subr.mxu0 0.0
    %417 = vmatpush1.msra.mxu0 %v189
    %418 = vmatprep.subr.mxu0 0.0
    %419 = vmatpush1.msra.mxu0 %v190
    %420 = vmatprep.subr.mxu0 0.0
    %421 = vmatpush1.msra.mxu0 %v191
    %422 = vmatprep.subr.mxu0 0.0
    %423 = vmatpush1.msra.mxu0 0.0
    %424 = vmatprep.subr.mxu0 0.0
    %425 = vmatpush1.msra.mxu0 0.0
    %426 = vmatprep.subr.mxu0 0.0
    %427 = vmatpush1.msra.mxu0 0.0
    %428 = vmatprep.subr.mxu0 0.0
    %429 = vmatpush1.msra.mxu0 0.0
    %430 = vmatprep.subr.mxu0 0.0
    %431 = vmatpush1.msra.mxu0 0.0
    %432 = vmatprep.subr.mxu0 0.0
    %433 = vmatpush1.msra.mxu0 0.0
    %434 = vmatprep.subr.mxu0 0.0
    %435 = vmatpush1.msra.mxu0 0.0
    %436 = vmatprep.subr.mxu0 0.0
    %437 = vmatpush1.msra.mxu0 0.0
    %438 = vmatprep.subr.mxu0 0.0
    %439 = vmatpush1.msra.mxu0 0.0
    %440 = vmatprep.subr.mxu0 0.0
    %441 = vmatpush1.msra.mxu0 0.0
    %442 = vmatprep.subr.mxu0 0.0
    %443 = vmatpush1.msra.mxu0 0.0
    %444 = vmatprep.subr.mxu0 0.0
    %445 = vmatpush1.msra.mxu0 0.0
    %446 = vmatprep.subr.mxu0 0.0
    %447 = vmatpush1.msra.mxu0 0.0
    %448 = vmatprep.subr.mxu0 0.0
    %449 = vmatpush1.msra.mxu0 0.0
    %450 = vmatprep.subr.mxu0 0.0
    %451 = vmatpush1.msra.mxu0 0.0
    %452 = vmatprep.subr.mxu0 0.0
    %453 = vmatpush1.msra.mxu0 0.0
    %454 = vmatprep.subr.mxu0 0.0
    %455 = vmatpush1.msra.mxu0 0.0
    %456 = vmatprep.subr.mxu0 0.0
    %457 = vmatpush1.msra.mxu0 0.0
    %458 = vmatprep.subr.mxu0 0.0
    %459 = vmatpush1.msra.mxu0 0.0
    %460 = vmatprep.subr.mxu0 0.0
    %461 = vmatpush1.msra.mxu0 0.0
    %462 = vmatprep.subr.mxu0 0.0
    %463 = vmatpush1.msra.mxu0 0.0
    %464 = vmatprep.subr.mxu0 0.0
    %465 = vmatpush1.msra.mxu0 0.0
    %466 = vmatprep.subr.mxu0 0.0
    %467 = vmatpush1.msra.mxu0 0.0
    %468 = vmatprep.subr.mxu0 0.0
    %469 = vmatpush1.msra.mxu0 0.0
    %470 = vmatprep.subr.mxu0 0.0
    %471 = vmatpush1.msra.mxu0 0.0
    %472 = vmatprep.subr.mxu0 0.0
    %473 = vmatpush1.msra.mxu0 0.0
    %474 = vmatprep.subr.mxu0 0.0
    %475 = vmatpush1.msra.mxu0 0.0
    %476 = vmatprep.subr.mxu0 0.0
    %477 = vmatpush1.msra.mxu0 0.0
    %478 = vmatprep.mubr.f32.mxu0 0.0
    %479 = vmatmul.mubr.f32.gmra.mrb[0].mxu0 %v412
    %v480 = vpop.f32.mrb[0].mxu0
    %v481 = vadd.f32 0.0, %v480
    %v482 = vpop.f32.mrb[0].mxu0
    %483 = vdwg.mxu0
    %v484 = vld [vmem:[%s4] sm:$0x1]
    %v485 = vld [vmem:[%s4 + $0x1] sm:$0x1]
    %v486 = vld [vmem:[%s4 + $0x2] sm:$0x1]
    %v487 = vld [vmem:[%s4 + $0x3] sm:$0x1]
    %v488 = vsel %vm39, 1, 0
    %v489 = vsel %vm40, 1, 0
    %v490 = vsel %vm41, 1, 0
    %v491 = vsel %vm42, 1, 0
    %492 = vset.pattern.permute.xlu0 0
    %493 = vperm.xlu0 %492, %v488
    %v494 = vpop.permute.xlu0 %493
    %495 = vset.pattern.permute.xlu0 0
    %496 = vperm.xlu0 %495, %v489
    %v497 = vpop.permute.xlu0 %496
    %498 = vset.pattern.permute.xlu0 0
    %499 = vperm.xlu0 %498, %v490
    %v500 = vpop.permute.xlu0 %499
    %501 = vset.pattern.permute.xlu0 0
    %502 = vperm.xlu0 %501, %v491
    %v503 = vpop.permute.xlu0 %502
    %vm504 = vcmp.eq.s32.totalorder %v494, 1
    %vm505 = vcmp.eq.s32.totalorder %v497, 1
    %vm506 = vcmp.eq.s32.totalorder %v500, 1
    %vm507 = vcmp.eq.s32.totalorder %v503, 1
    %v512 = vlaneseq
    %v513 = vshrl.u32 %v512, 7
    %v514 = vsub.s32 0, %v513
    %v515 = vrot.slane %v484, %v514
    %v516 = vlaneseq
    %v517 = vshrl.u32 %v516, 7
    %v518 = vsub.s32 0, %v517
    %v519 = vrot.slane %v485, %v518
    %v520 = vlaneseq
    %v521 = vshrl.u32 %v520, 7
    %v522 = vsub.s32 0, %v521
    %v523 = vrot.slane %v486, %v522
    %v524 = vlaneseq
    %v525 = vshrl.u32 %v524, 7
    %v526 = vsub.s32 0, %v525
    %v527 = vrot.slane %v487, %v526
    %v532 = vsel %vm504, %v515, %v262
    %v533 = vsel %vm505, %v519, %v335
    %v534 = vsel %vm506, %v523, %v408
    %v535 = vsel %vm507, %v527, %v481
    %v536 = vsel %vm131, %v532, 0.0
    %v537 = vsel %vm131, %v533, 0.0
    %v538 = vadd.f32 %v536, %v537
    %v539 = vsel %vm131, %v534, 0.0
    %v540 = vadd.f32 %v538, %v539
    %v541 = vsel %vm131, %v535, 0.0
    %v542 = vadd.f32 %v540, %v541
    %543 = vst.msk [vmem:[#allocation5] sm:$0xff] %vm131, %v542
    // Predicated region
    $region26: #{tpu_custom_call.1} parent=1 // pred_check
      _
    $region27: #{tpu_custom_call.1} parent=1 // pred_check_branch
      %545 = sbr.rel (0) target = $region29
    $region28: #{tpu_custom_call.1} parent=1 // pred_region
      %s547 = ssub.s32 128, 128
      %548 = vsyncadd [#allocation4], %s547
      %s550 = sshll.u32 [#allocation5], 4
      %s551 = int_to_ptr.vmem [resolvable:$true] %s550
      %553 = dma.vmem_to_hbm [thread:$0]  %s551, 128, %s5, [#allocation4]
    $region29: #{tpu_custom_call.1} parent=1 // pred_fallthru
      _
    // Predicated region
    $region30: #{tpu_custom_call.1} parent=1 // pred_check
      _
    $region31: #{tpu_custom_call.1} parent=1 // pred_check_branch
      %555 = sbr.rel (0) target = $region33
    $region32: #{tpu_custom_call.1} parent=1 // pred_region
      %556 = dma.done [#allocation4], 128
    $region33: #{tpu_custom_call.1} parent=1 // pred_fallthru
      _
    %557 = vsyncpa [#allocation3], 1
    %558 = vsyncpa [#allocation4], 1

</llo_original>
